<compile_context>
chip_gen: v7x
topology: tpu7x:2x2x1
jax: 0.10.0
libtpu: 0.0.40
codegen_flags: <defaults>
</compile_context>

<pallas_src>
import jax
import jax.numpy as jnp
from jax.experimental import pallas as pl
from jax.experimental.pallas import tpu as pltpu

LANE = 128


def _add_relu_kernel(a_ref, b_ref, o_ref):
    s = a_ref[...] + b_ref[...]
    o_ref[...] = jnp.maximum(s, jnp.zeros((), s.dtype))


def _sublane_pack(dtype):
    # Sub-32-bit dtypes pack along sublanes: 8 for 32-bit, 16 for bf16, 32 for int8/fp8.
    itemsize = jnp.dtype(dtype).itemsize
    return 32 // max(itemsize, 1) if itemsize < 4 else 8


def _pick_lanes(total, pack):
    # Widest lane count (multiple of 128, up to 1024) that factors cleanly
    # with a pack-aligned row count.
    lanes = LANE
    for cand in range(2 * LANE, 8 * LANE + 1, LANE):
        if total % cand == 0 and (total // cand) % pack == 0:
            lanes = cand
    return lanes


def _row_tiled_call(a2, b2, rows, lanes, dtype, tile_block_bytes):
    itemsize = jnp.dtype(dtype).itemsize
    pack = _sublane_pack(dtype)
    max_rows = max(pack, (tile_block_bytes // (lanes * itemsize)) // pack * pack)
    row_tile = pack
    t = pack
    while t <= max_rows:
        if rows % t == 0:
            row_tile = t
        t += pack
    grid = (rows // row_tile,)
    return pl.pallas_call(
        _add_relu_kernel,
        out_shape=jax.ShapeDtypeStruct((rows, lanes), dtype),
        grid=grid,
        in_specs=[
            pl.BlockSpec((row_tile, lanes), lambda i: (i, 0)),
            pl.BlockSpec((row_tile, lanes), lambda i: (i, 0)),
        ],
        out_specs=pl.BlockSpec((row_tile, lanes), lambda i: (i, 0)),
        compiler_params=pltpu.CompilerParams(
            dimension_semantics=("parallel",),
        ),
    )(a2, b2)


def add_relu(x60, x62):
    assert x60.shape == x62.shape and x60.dtype == x62.dtype
    orig_shape = x60.shape
    dtype = x60.dtype
    total = x60.size
    itemsize = jnp.dtype(dtype).itemsize
    pack = _sublane_pack(dtype)
    vreg_elems = LANE * pack

    # Budgets: single-block path has no pipelining (3 live operands);
    # tiled path double-buffers (3 x 2 x block), kept v5e-safe.
    single_block_bytes = 4 * 1024 * 1024
    tile_block_bytes = 1 * 1024 * 1024

    if total % vreg_elems == 0:
        lanes = _pick_lanes(total, pack)
        rows = total // lanes
        a2 = x60.reshape(rows, lanes)
        b2 = x62.reshape(rows, lanes)

        if total * itemsize <= single_block_bytes:
            # Hot path: no grid, no pipeline overhead, whole slab in VMEM,
            # lane-dense unmasked stores.
            out2 = pl.pallas_call(
                _add_relu_kernel,
                out_shape=jax.ShapeDtypeStruct((rows, lanes), dtype),
            )(a2, b2)
        else:
            # Big shapes: row-tiled grid (>= 2 steps) sharded across cores.
            out2 = _row_tiled_call(a2, b2, rows, lanes, dtype, tile_block_bytes)
        return out2.reshape(orig_shape)

    # Ragged fallback: element count is not a whole number of (pack,128) vregs.
    if total * itemsize <= single_block_bytes:
        # Stay unpadded: a (1, total) full-extent block is legal (last dim equals
        # the full array dim); no pad/slice HBM round trips.
        a2 = x60.reshape(1, total)
        b2 = x62.reshape(1, total)
        out2 = pl.pallas_call(
            _add_relu_kernel,
            out_shape=jax.ShapeDtypeStruct((1, total), dtype),
        )(a2, b2)
        return out2.reshape(orig_shape)

    # TODO(synk): very large ragged shapes still pad once; a masked last-block
    # grid would avoid the extra pad/slice HBM traffic.
    padded_total = pl.cdiv(total, vreg_elems) * vreg_elems
    lanes = _pick_lanes(padded_total, pack)
    rows = padded_total // lanes

    def to_slab(x):
        flat = x.reshape(-1)
        flat = jnp.pad(flat, (0, padded_total - total))
        return flat.reshape(rows, lanes)

    out2 = _row_tiled_call(to_slab(x60), to_slab(x62), rows, lanes, dtype,
                           tile_block_bytes)
    return out2.reshape(-1)[:total].reshape(orig_shape)


if __name__ == "__main__":
    key = jax.random.PRNGKey(0)
    k1, k2 = jax.random.split(key)
    # Shapes consistent with the module's forward: NCHW [1, 256, 14, 14]
    x60 = jax.random.normal(k1, (1, 256, 14, 14), dtype=jnp.float32)
    x62 = jax.random.normal(k2, (1, 256, 14, 14), dtype=jnp.float32)

    out = add_relu(x60, x62)
    out = jax.block_until_ready(out)

    # Reference check in plain JAX
    ref = jnp.maximum(x60 + x62, 0.0)
    assert out.shape == ref.shape and out.dtype == ref.dtype
    assert jnp.allclose(out, ref), "mismatch vs reference"
    print("KERNEL_OK")
</pallas_src>

<mosaic_0001>
module attributes {stable_mosaic.version = 11 : i64} {
  func.func @_add_relu_kernel(%arg0: memref<56x896xf32, #tpu.memory_space<vmem>>, %arg1: memref<56x896xf32, #tpu.memory_space<vmem>>, %arg2: memref<56x896xf32, #tpu.memory_space<vmem>>) attributes {dimension_semantics = [], scalar_prefetch = 0 : i64, scratch_operands = 0 : i64, tpu.core_type = #tpu.core_type<tc>} {
    %c0 = arith.constant 0 : index
    %c0_0 = arith.constant 0 : index
    %0 = vector.load %arg0[%c0, %c0_0] : memref<56x896xf32, #tpu.memory_space<vmem>>, vector<56x896xf32>
    %c0_1 = arith.constant 0 : index
    %c0_2 = arith.constant 0 : index
    %1 = vector.load %arg1[%c0_1, %c0_2] : memref<56x896xf32, #tpu.memory_space<vmem>>, vector<56x896xf32>
    %2 = arith.addf %0, %1 : vector<56x896xf32>
    %cst = arith.constant 0.000000e+00 : f32
    %3 = vector.broadcast %cst : f32 to vector<56x896xf32>
    %4 = arith.maximumf %2, %3 : vector<56x896xf32>
    %c0_3 = arith.constant 0 : index
    %c0_4 = arith.constant 0 : index
    %5 = vector.load %arg2[%c0_3, %c0_4] : memref<56x896xf32, #tpu.memory_space<vmem>>, vector<56x896xf32>
    tpu.vector_store %arg2[%c0_3, %c0_4], %4 {strides = array<i32>} : memref<56x896xf32, #tpu.memory_space<vmem>>, vector<56x896xf32>,
    return
  }
}

</mosaic_0001>

<llo_original>
// kernel: tpu_custom_call.1
$region0: #{tpu_custom_call.1}
  #allocation0 [shape = 'u32[]', space=smem, size = 0x4, offset = 0x4, fixed_abs, tag = 'smem constant byte address 0x4 - core index']
  #allocation1 [shape = 'u32[144,128]{1,0:T(1,128)}', space=vmem, size = 0x12000, scoped, tag = 'internal scratch']
  %s0 = inlined_call_operand.hbm [shape: f32[56,896], index: 0, kind: input, shape index: {}]
  %s1 = inlined_call_operand.hbm [shape: f32[56,896], index: 1, kind: input, shape index: {}]
  %s2 = inlined_call_operand.hbm [shape: f32[56,896], index: 2, kind: output, shape index: {}]
  %s3 = sld [smem:[#allocation0]]
  $region26: #{tpu_custom_call.1} parent=0
    _
  %s5 = ssub.s32 1, %s3
  %s6 = scalar_select 0, %s5, %s3
  $region1: #{tpu_custom_call.1} parent=0
    #allocation2 [shape = 'u8[200704]{0}', space=vmem, size = 0x31000, scoped, tag = 'input window, operand 0, single buffered']
    #allocation3 [shape = 's32[1]{0}', space=sflag, size = 0x4, scoped, tag = 'scoped memory for tpu_custom_call.1']
    #allocation4 [shape = 's32[1]{0}', space=sflag, size = 0x4, scoped, tag = 'scoped memory for tpu_custom_call.1']
    #allocation5 [shape = 'u8[200704]{0}', space=vmem, size = 0x31000, scoped, tag = 'input window, operand 1, single buffered']
    #allocation6 [shape = 's32[1]{0}', space=sflag, size = 0x4, scoped, tag = 'scoped memory for tpu_custom_call.1']
    #allocation7 [shape = 'u8[200704]{0}', space=vmem, size = 0x31000, scoped, tag = 'output window, operand 0, single buffered']
    %7 = vsyncpa [#allocation3], 0
    %8 = vsyncpa [#allocation6], 0
    %9 = vsyncpa [#allocation4], 0
    // Predicated region
    $region2: #{tpu_custom_call.1} parent=1 // pred_check
      _
    $region3: #{tpu_custom_call.1} parent=1 // pred_check_branch
      %11 = sbr.rel (0) target = $region5
    $region4: #{tpu_custom_call.1} parent=1 // pred_region
      %s13 = ssub.s32 6272, 6272
      %14 = vsyncadd [#allocation3], %s13
      %s15 = sshll.u32 [#allocation2], 4
      %s16 = int_to_ptr.vmem [resolvable:$true] %s15
      %21 = dma.hbm_to_vmem [thread:$0]  %s0, 6272, %s16, [#allocation3], 896, 896, 56
    $region5: #{tpu_custom_call.1} parent=1 // pred_fallthru
      _
    // Predicated region
    $region6: #{tpu_custom_call.1} parent=1 // pred_check
      _
    $region7: #{tpu_custom_call.1} parent=1 // pred_check_branch
      %23 = sbr.rel (0) target = $region9
    $region8: #{tpu_custom_call.1} parent=1 // pred_region
      %s25 = ssub.s32 6272, 6272
      %26 = vsyncadd [#allocation6], %s25
      %s27 = sshll.u32 [#allocation5], 4
      %s28 = int_to_ptr.vmem [resolvable:$true] %s27
      %33 = dma.hbm_to_vmem [thread:$0]  %s1, 6272, %s28, [#allocation6], 896, 896, 56
    $region9: #{tpu_custom_call.1} parent=1 // pred_fallthru
      _
    // Predicated region
    $region10: #{tpu_custom_call.1} parent=1 // pred_check
      _
    $region11: #{tpu_custom_call.1} parent=1 // pred_check_branch
      %35 = sbr.rel (0) target = $region13
    $region12: #{tpu_custom_call.1} parent=1 // pred_region
      %36 = dma.done [#allocation3], 6272
    $region13: #{tpu_custom_call.1} parent=1 // pred_fallthru
      _
    // Predicated region
    $region14: #{tpu_custom_call.1} parent=1 // pred_check
      _
    $region15: #{tpu_custom_call.1} parent=1 // pred_check_branch
      %38 = sbr.rel (0) target = $region17
    $region16: #{tpu_custom_call.1} parent=1 // pred_region
      %39 = dma.done [#allocation6], 6272
    $region17: #{tpu_custom_call.1} parent=1 // pred_fallthru
      _
    %v40 = vld [vmem:[#allocation2] sm:$0xff]
    %v41 = vld [vmem:[#allocation2 + $0x8] sm:$0xff]
    %v42 = vld [vmem:[#allocation2 + $0x10] sm:$0xff]
    %v43 = vld [vmem:[#allocation2 + $0x18] sm:$0xff]
    %v44 = vld [vmem:[#allocation2 + $0x20] sm:$0xff]
    %v45 = vld [vmem:[#allocation2 + $0x28] sm:$0xff]
    %v46 = vld [vmem:[#allocation2 + $0x30] sm:$0xff]
    %v47 = vld [vmem:[#allocation2 + $0x38] sm:$0xff]
    %v48 = vld [vmem:[#allocation2 + $0x40] sm:$0xff]
    %v49 = vld [vmem:[#allocation2 + $0x48] sm:$0xff]
    %v50 = vld [vmem:[#allocation2 + $0x50] sm:$0xff]
    %v51 = vld [vmem:[#allocation2 + $0x58] sm:$0xff]
    %v52 = vld [vmem:[#allocation2 + $0x60] sm:$0xff]
    %v53 = vld [vmem:[#allocation2 + $0x68] sm:$0xff]
    %v54 = vld [vmem:[#allocation2 + $0x70] sm:$0xff]
    %v55 = vld [vmem:[#allocation2 + $0x78] sm:$0xff]
    %v56 = vld [vmem:[#allocation2 + $0x80] sm:$0xff]
    %v57 = vld [vmem:[#allocation2 + $0x88] sm:$0xff]
    %v58 = vld [vmem:[#allocation2 + $0x90] sm:$0xff]
    %v59 = vld [vmem:[#allocation2 + $0x98] sm:$0xff]
    %v60 = vld [vmem:[#allocation2 + $0xa0] sm:$0xff]
    %v61 = vld [vmem:[#allocation2 + $0xa8] sm:$0xff]
    %v62 = vld [vmem:[#allocation2 + $0xb0] sm:$0xff]
    %v63 = vld [vmem:[#allocation2 + $0xb8] sm:$0xff]
    %v64 = vld [vmem:[#allocation2 + $0xc0] sm:$0xff]
    %v65 = vld [vmem:[#allocation2 + $0xc8] sm:$0xff]
    %v66 = vld [vmem:[#allocation2 + $0xd0] sm:$0xff]
    %v67 = vld [vmem:[#allocation2 + $0xd8] sm:$0xff]
    %v68 = vld [vmem:[#allocation2 + $0xe0] sm:$0xff]
    %v69 = vld [vmem:[#allocation2 + $0xe8] sm:$0xff]
    %v70 = vld [vmem:[#allocation2 + $0xf0] sm:$0xff]
    %v71 = vld [vmem:[#allocation2 + $0xf8] sm:$0xff]
    %v72 = vld [vmem:[#allocation2 + $0x100] sm:$0xff]
    %v73 = vld [vmem:[#allocation2 + $0x108] sm:$0xff]
    %v74 = vld [vmem:[#allocation2 + $0x110] sm:$0xff]
    %v75 = vld [vmem:[#allocation2 + $0x118] sm:$0xff]
    %v76 = vld [vmem:[#allocation2 + $0x120] sm:$0xff]
    %v77 = vld [vmem:[#allocation2 + $0x128] sm:$0xff]
    %v78 = vld [vmem:[#allocation2 + $0x130] sm:$0xff]
    %v79 = vld [vmem:[#allocation2 + $0x138] sm:$0xff]
    %v80 = vld [vmem:[#allocation2 + $0x140] sm:$0xff]
    %v81 = vld [vmem:[#allocation2 + $0x148] sm:$0xff]
    %v82 = vld [vmem:[#allocation2 + $0x150] sm:$0xff]
    %v83 = vld [vmem:[#allocation2 + $0x158] sm:$0xff]
    %v84 = vld [vmem:[#allocation2 + $0x160] sm:$0xff]
    %v85 = vld [vmem:[#allocation2 + $0x168] sm:$0xff]
    %v86 = vld [vmem:[#allocation2 + $0x170] sm:$0xff]
    %v87 = vld [vmem:[#allocation2 + $0x178] sm:$0xff]
    %v88 = vld [vmem:[#allocation2 + $0x180] sm:$0xff]
    %v89 = vld [vmem:[#allocation5] sm:$0xff]
    %v90 = vld [vmem:[#allocation5 + $0x8] sm:$0xff]
    %v91 = vld [vmem:[#allocation5 + $0x10] sm:$0xff]
    %v92 = vld [vmem:[#allocation5 + $0x18] sm:$0xff]
    %v93 = vld [vmem:[#allocation5 + $0x20] sm:$0xff]
    %v94 = vld [vmem:[#allocation5 + $0x28] sm:$0xff]
    %v95 = vld [vmem:[#allocation5 + $0x30] sm:$0xff]
    %v96 = vld [vmem:[#allocation5 + $0x38] sm:$0xff]
    %v97 = vld [vmem:[#allocation5 + $0x40] sm:$0xff]
    %v98 = vld [vmem:[#allocation5 + $0x48] sm:$0xff]
    %v99 = vld [vmem:[#allocation5 + $0x50] sm:$0xff]
    %v100 = vld [vmem:[#allocation5 + $0x58] sm:$0xff]
    %v101 = vld [vmem:[#allocation5 + $0x60] sm:$0xff]
    %v102 = vld [vmem:[#allocation5 + $0x68] sm:$0xff]
    %v103 = vld [vmem:[#allocation5 + $0x70] sm:$0xff]
    %v104 = vld [vmem:[#allocation5 + $0x78] sm:$0xff]
    %v105 = vld [vmem:[#allocation5 + $0x80] sm:$0xff]
    %v106 = vld [vmem:[#allocation5 + $0x88] sm:$0xff]
    %v107 = vld [vmem:[#allocation5 + $0x90] sm:$0xff]
    %v108 = vld [vmem:[#allocation5 + $0x98] sm:$0xff]
    %v109 = vld [vmem:[#allocation5 + $0xa0] sm:$0xff]
    %v110 = vld [vmem:[#allocation5 + $0xa8] sm:$0xff]
    %v111 = vld [vmem:[#allocation5 + $0xb0] sm:$0xff]
    %v112 = vld [vmem:[#allocation5 + $0xb8] sm:$0xff]
    %v113 = vld [vmem:[#allocation5 + $0xc0] sm:$0xff]
    %v114 = vld [vmem:[#allocation5 + $0xc8] sm:$0xff]
    %v115 = vld [vmem:[#allocation5 + $0xd0] sm:$0xff]
    %v116 = vld [vmem:[#allocation5 + $0xd8] sm:$0xff]
    %v117 = vld [vmem:[#allocation5 + $0xe0] sm:$0xff]
    %v118 = vld [vmem:[#allocation5 + $0xe8] sm:$0xff]
    %v119 = vld [vmem:[#allocation5 + $0xf0] sm:$0xff]
    %v120 = vld [vmem:[#allocation5 + $0xf8] sm:$0xff]
    %v121 = vld [vmem:[#allocation5 + $0x100] sm:$0xff]
    %v122 = vld [vmem:[#allocation5 + $0x108] sm:$0xff]
    %v123 = vld [vmem:[#allocation5 + $0x110] sm:$0xff]
    %v124 = vld [vmem:[#allocation5 + $0x118] sm:$0xff]
    %v125 = vld [vmem:[#allocation5 + $0x120] sm:$0xff]
    %v126 = vld [vmem:[#allocation5 + $0x128] sm:$0xff]
    %v127 = vld [vmem:[#allocation5 + $0x130] sm:$0xff]
    %v128 = vld [vmem:[#allocation5 + $0x138] sm:$0xff]
    %v129 = vld [vmem:[#allocation5 + $0x140] sm:$0xff]
    %v130 = vld [vmem:[#allocation5 + $0x148] sm:$0xff]
    %v131 = vld [vmem:[#allocation5 + $0x150] sm:$0xff]
    %v132 = vld [vmem:[#allocation5 + $0x158] sm:$0xff]
    %v133 = vld [vmem:[#allocation5 + $0x160] sm:$0xff]
    %v134 = vld [vmem:[#allocation5 + $0x168] sm:$0xff]
    %v135 = vld [vmem:[#allocation5 + $0x170] sm:$0xff]
    %v136 = vld [vmem:[#allocation5 + $0x178] sm:$0xff]
    %v137 = vld [vmem:[#allocation5 + $0x180] sm:$0xff]
    %v138 = vadd.f32 %v40, %v89
    %v139 = vadd.f32 %v41, %v90
    %v140 = vadd.f32 %v42, %v91
    %v141 = vadd.f32 %v43, %v92
    %v142 = vadd.f32 %v44, %v93
    %v143 = vadd.f32 %v45, %v94
    %v144 = vadd.f32 %v46, %v95
    %v145 = vadd.f32 %v47, %v96
    %v146 = vadd.f32 %v48, %v97
    %v147 = vadd.f32 %v49, %v98
    %v148 = vadd.f32 %v50, %v99
    %v149 = vadd.f32 %v51, %v100
    %v150 = vadd.f32 %v52, %v101
    %v151 = vadd.f32 %v53, %v102
    %v152 = vadd.f32 %v54, %v103
    %v153 = vadd.f32 %v55, %v104
    %v154 = vadd.f32 %v56, %v105
    %v155 = vadd.f32 %v57, %v106
    %v156 = vadd.f32 %v58, %v107
    %v157 = vadd.f32 %v59, %v108
    %v158 = vadd.f32 %v60, %v109
    %v159 = vadd.f32 %v61, %v110
    %v160 = vadd.f32 %v62, %v111
    %v161 = vadd.f32 %v63, %v112
    %v162 = vadd.f32 %v64, %v113
    %v163 = vadd.f32 %v65, %v114
    %v164 = vadd.f32 %v66, %v115
    %v165 = vadd.f32 %v67, %v116
    %v166 = vadd.f32 %v68, %v117
    %v167 = vadd.f32 %v69, %v118
    %v168 = vadd.f32 %v70, %v119
    %v169 = vadd.f32 %v71, %v120
    %v170 = vadd.f32 %v72, %v121
    %v171 = vadd.f32 %v73, %v122
    %v172 = vadd.f32 %v74, %v123
    %v173 = vadd.f32 %v75, %v124
    %v174 = vadd.f32 %v76, %v125
    %v175 = vadd.f32 %v77, %v126
    %v176 = vadd.f32 %v78, %v127
    %v177 = vadd.f32 %v79, %v128
    %v178 = vadd.f32 %v80, %v129
    %v179 = vadd.f32 %v81, %v130
    %v180 = vadd.f32 %v82, %v131
    %v181 = vadd.f32 %v83, %v132
    %v182 = vadd.f32 %v84, %v133
    %v183 = vadd.f32 %v85, %v134
    %v184 = vadd.f32 %v86, %v135
    %v185 = vadd.f32 %v87, %v136
    %v186 = vadd.f32 %v88, %v137
    %v187 = vmax.f32 %v138, 0.0
    %v188 = vmax.f32 %v139, 0.0
    %v189 = vmax.f32 %v140, 0.0
    %v190 = vmax.f32 %v141, 0.0
    %v191 = vmax.f32 %v142, 0.0
    %v192 = vmax.f32 %v143, 0.0
    %v193 = vmax.f32 %v144, 0.0
    %v194 = vmax.f32 %v145, 0.0
    %v195 = vmax.f32 %v146, 0.0
    %v196 = vmax.f32 %v147, 0.0
    %v197 = vmax.f32 %v148, 0.0
    %v198 = vmax.f32 %v149, 0.0
    %v199 = vmax.f32 %v150, 0.0
    %v200 = vmax.f32 %v151, 0.0
    %v201 = vmax.f32 %v152, 0.0
    %v202 = vmax.f32 %v153, 0.0
    %v203 = vmax.f32 %v154, 0.0
    %v204 = vmax.f32 %v155, 0.0
    %v205 = vmax.f32 %v156, 0.0
    %v206 = vmax.f32 %v157, 0.0
    %v207 = vmax.f32 %v158, 0.0
    %v208 = vmax.f32 %v159, 0.0
    %v209 = vmax.f32 %v160, 0.0
    %v210 = vmax.f32 %v161, 0.0
    %v211 = vmax.f32 %v162, 0.0
    %v212 = vmax.f32 %v163, 0.0
    %v213 = vmax.f32 %v164, 0.0
    %v214 = vmax.f32 %v165, 0.0
    %v215 = vmax.f32 %v166, 0.0
    %v216 = vmax.f32 %v167, 0.0
    %v217 = vmax.f32 %v168, 0.0
    %v218 = vmax.f32 %v169, 0.0
    %v219 = vmax.f32 %v170, 0.0
    %v220 = vmax.f32 %v171, 0.0
    %v221 = vmax.f32 %v172, 0.0
    %v222 = vmax.f32 %v173, 0.0
    %v223 = vmax.f32 %v174, 0.0
    %v224 = vmax.f32 %v175, 0.0
    %v225 = vmax.f32 %v176, 0.0
    %v226 = vmax.f32 %v177, 0.0
    %v227 = vmax.f32 %v178, 0.0
    %v228 = vmax.f32 %v179, 0.0
    %v229 = vmax.f32 %v180, 0.0
    %v230 = vmax.f32 %v181, 0.0
    %v231 = vmax.f32 %v182, 0.0
    %v232 = vmax.f32 %v183, 0.0
    %v233 = vmax.f32 %v184, 0.0
    %v234 = vmax.f32 %v185, 0.0
    %v235 = vmax.f32 %v186, 0.0
    %236 = vst [vmem:[#allocation7] sm:$0xff] %v187
    %237 = vst [vmem:[#allocation7 + $0x8] sm:$0xff] %v188
    %238 = vst [vmem:[#allocation7 + $0x10] sm:$0xff] %v189
    %239 = vst [vmem:[#allocation7 + $0x18] sm:$0xff] %v190
    %240 = vst [vmem:[#allocation7 + $0x20] sm:$0xff] %v191
    %241 = vst [vmem:[#allocation7 + $0x28] sm:$0xff] %v192
    %242 = vst [vmem:[#allocation7 + $0x30] sm:$0xff] %v193
    %243 = vst [vmem:[#allocation7 + $0x38] sm:$0xff] %v194
    %244 = vst [vmem:[#allocation7 + $0x40] sm:$0xff] %v195
    %245 = vst [vmem:[#allocation7 + $0x48] sm:$0xff] %v196
    %246 = vst [vmem:[#allocation7 + $0x50] sm:$0xff] %v197
    %247 = vst [vmem:[#allocation7 + $0x58] sm:$0xff] %v198
    %248 = vst [vmem:[#allocation7 + $0x60] sm:$0xff] %v199
    %249 = vst [vmem:[#allocation7 + $0x68] sm:$0xff] %v200
    %250 = vst [vmem:[#allocation7 + $0x70] sm:$0xff] %v201
    %251 = vst [vmem:[#allocation7 + $0x78] sm:$0xff] %v202
    %252 = vst [vmem:[#allocation7 + $0x80] sm:$0xff] %v203
    %253 = vst [vmem:[#allocation7 + $0x88] sm:$0xff] %v204
    %254 = vst [vmem:[#allocation7 + $0x90] sm:$0xff] %v205
    %255 = vst [vmem:[#allocation7 + $0x98] sm:$0xff] %v206
    %256 = vst [vmem:[#allocation7 + $0xa0] sm:$0xff] %v207
    %257 = vst [vmem:[#allocation7 + $0xa8] sm:$0xff] %v208
    %258 = vst [vmem:[#allocation7 + $0xb0] sm:$0xff] %v209
    %259 = vst [vmem:[#allocation7 + $0xb8] sm:$0xff] %v210
    %260 = vst [vmem:[#allocation7 + $0xc0] sm:$0xff] %v211
    %261 = vst [vmem:[#allocation7 + $0xc8] sm:$0xff] %v212
    %262 = vst [vmem:[#allocation7 + $0xd0] sm:$0xff] %v213
    %263 = vst [vmem:[#allocation7 + $0xd8] sm:$0xff] %v214
    %264 = vst [vmem:[#allocation7 + $0xe0] sm:$0xff] %v215
    %265 = vst [vmem:[#allocation7 + $0xe8] sm:$0xff] %v216
    %266 = vst [vmem:[#allocation7 + $0xf0] sm:$0xff] %v217
    %267 = vst [vmem:[#allocation7 + $0xf8] sm:$0xff] %v218
    %268 = vst [vmem:[#allocation7 + $0x100] sm:$0xff] %v219
    %269 = vst [vmem:[#allocation7 + $0x108] sm:$0xff] %v220
    %270 = vst [vmem:[#allocation7 + $0x110] sm:$0xff] %v221
    %271 = vst [vmem:[#allocation7 + $0x118] sm:$0xff] %v222
    %272 = vst [vmem:[#allocation7 + $0x120] sm:$0xff] %v223
    %273 = vst [vmem:[#allocation7 + $0x128] sm:$0xff] %v224
    %274 = vst [vmem:[#allocation7 + $0x130] sm:$0xff] %v225
    %275 = vst [vmem:[#allocation7 + $0x138] sm:$0xff] %v226
    %276 = vst [vmem:[#allocation7 + $0x140] sm:$0xff] %v227
    %277 = vst [vmem:[#allocation7 + $0x148] sm:$0xff] %v228
    %278 = vst [vmem:[#allocation7 + $0x150] sm:$0xff] %v229
    %279 = vst [vmem:[#allocation7 + $0x158] sm:$0xff] %v230
    %280 = vst [vmem:[#allocation7 + $0x160] sm:$0xff] %v231
    %281 = vst [vmem:[#allocation7 + $0x168] sm:$0xff] %v232
    %282 = vst [vmem:[#allocation7 + $0x170] sm:$0xff] %v233
    %283 = vst [vmem:[#allocation7 + $0x178] sm:$0xff] %v234
    %284 = vst [vmem:[#allocation7 + $0x180] sm:$0xff] %v235
    // Predicated region
    $region18: #{tpu_custom_call.1} parent=1 // pred_check
      _
    $region19: #{tpu_custom_call.1} parent=1 // pred_check_branch
      %286 = sbr.rel (0) target = $region21
    $region20: #{tpu_custom_call.1} parent=1 // pred_region
      %s288 = ssub.s32 6272, 6272
      %289 = vsyncadd [#allocation4], %s288
      %s290 = sshll.u32 [#allocation7], 4
      %s291 = int_to_ptr.vmem [resolvable:$true] %s290
      %296 = dma.vmem_to_hbm [thread:$0]  %s291, 6272, %s2, [#allocation4], 896, 896, 56
    $region21: #{tpu_custom_call.1} parent=1 // pred_fallthru
      _
    // Predicated region
    $region22: #{tpu_custom_call.1} parent=1 // pred_check
      _
    $region23: #{tpu_custom_call.1} parent=1 // pred_check_branch
      %298 = sbr.rel (0) target = $region25
    $region24: #{tpu_custom_call.1} parent=1 // pred_region
      %299 = dma.done [#allocation4], 6272
    $region25: #{tpu_custom_call.1} parent=1 // pred_fallthru
      _
    %300 = vsyncpa [#allocation3], 1
    %301 = vsyncpa [#allocation6], 1
    %302 = vsyncpa [#allocation4], 1

</llo_original>
